<compile_context>
chip_gen: v6e
topology: v6e:2x2x1
jax: 0.10.0
libtpu: 0.0.40
codegen_flags: <defaults>
</compile_context>

<pallas_src>
import math

import jax
import jax.numpy as jnp
from jax.experimental import pallas as pl
from jax.experimental.pallas import tpu as pltpu


# ----------------------------------------------------------------------------
# Pallas kernel
# ----------------------------------------------------------------------------

def _soft_pos_embed_kernel(x_ref, g_ref, w_ref, o_ref):
    """o = x + (W @ G)[None]  with x:(1,C,hw), G:(8,hw), W:(C,8).

    The bias is already folded into W (column 4) / G (row of ones), so the
    matmul produces dense(pos_embedding) in channel-major (C, hw) layout and
    the add is a plain NCHW broadcast — no in-kernel transpose of the features.
    """
    pos = jnp.dot(w_ref[...], g_ref[...], preferred_element_type=jnp.float32)
    o_ref[...] = (x_ref[...].astype(jnp.float32) + pos[None]).astype(o_ref.dtype)


def soft_position_embedding(features, pos_grid_t, weight, bias):
    """features:(B,C,H,W) NCHW; pos_grid_t:(8,H*W) (row 4 = ones); weight:(C,4); bias:(C,)."""
    assert features.ndim == 4, "SoftPositionEmbedding expects a 4-D NCHW tensor"
    B, C, H, W = features.shape
    HW = H * W
    assert pos_grid_t.shape == (8, HW)
    assert weight.shape == (C, 4) and bias.shape == (C,)

    x = features.reshape(B, C, HW)                       # order-preserving view, stays NCHW

    # Fold the bias into the padded weight: columns = [w0 w1 w2 w3 | bias | 0 0 0],
    # matching pos_grid_t rows = [h, w, 1-h, 1-w | ones | 0 0 0].
    w8 = jnp.concatenate(
        [weight.astype(jnp.float32),
         bias.astype(jnp.float32).reshape(C, 1),
         jnp.zeros((C, 3), jnp.float32)],
        axis=1)                                          # (C, 8)

    # Spatial tile: full extent when small; otherwise halve while remaining a
    # multiple of 128 so blocks stay lane-dense and a feature block stays under
    # ~2 MiB f32 (in+out double-buffered fits the 16 MiB v5e scoped-VMEM default).
    hw_tile = HW
    if HW % 128 == 0:
        budget_elems = 512 * 1024                        # ~2 MiB f32 per feature block
        while C * hw_tile > budget_elems and hw_tile % 256 == 0:
            hw_tile //= 2
    n_hw = HW // hw_tile

    out = pl.pallas_call(
        _soft_pos_embed_kernel,
        out_shape=jax.ShapeDtypeStruct((B, C, HW), features.dtype),
        grid=(B, n_hw),
        in_specs=[
            pl.BlockSpec((1, C, hw_tile), lambda b, j: (b, 0, j)),   # features (NCHW)
            pl.BlockSpec((8, hw_tile), lambda b, j: (0, j)),         # pos grid (chan-major)
            pl.BlockSpec((C, 8), lambda b, j: (0, 0)),               # dense weight (+bias col)
        ],
        out_specs=pl.BlockSpec((1, C, hw_tile), lambda b, j: (b, 0, j)),
        compiler_params=pltpu.CompilerParams(
            dimension_semantics=("parallel", "parallel")),
    )(x, pos_grid_t, w8)
    return out.reshape(B, C, H, W)


# ----------------------------------------------------------------------------
# Parameter / buffer construction (mirrors the PyTorch module)
# ----------------------------------------------------------------------------

def make_position_grid(resolution):
    """Channel-major flattened positional grid, padded 4->8 rows: (8, H*W).

    Rows 0..3 = [h, w, 1-h, 1-w]; row 4 = ones (carries the Linear bias after
    it is folded into the weight); rows 5..7 = zeros (alignment padding).
    """
    lin = jnp.linspace(0.0, 1.0, resolution)
    h_grid, w_grid = jnp.meshgrid(lin, lin, indexing="ij")  # torch.meshgrid default ('ij')
    planes = jnp.stack([h_grid, w_grid, 1.0 - h_grid, 1.0 - w_grid], axis=0)  # (4, H, W)
    grid_t = planes.reshape(4, resolution * resolution).astype(jnp.float32)
    ones = jnp.ones((1, resolution * resolution), jnp.float32)
    zeros = jnp.zeros((3, resolution * resolution), jnp.float32)
    return jnp.concatenate([grid_t, ones, zeros], axis=0)   # (8, H*W)


def init_soft_position_embedding(key, n_channels, resolution):
    # nn.Linear(4, n_channels): weight (C, 4) xavier_uniform, bias zero-filled.
    bound = math.sqrt(6.0 / (4 + n_channels))
    weight = jax.random.uniform(key, (n_channels, 4), jnp.float32, -bound, bound)
    bias = jnp.zeros((n_channels,), jnp.float32)
    return {"weight": weight, "bias": bias,
            "pos_grid_t": make_position_grid(resolution)}


def soft_position_embedding_ref(features, resolution, weight, bias):
    """Plain-JAX reference of the PyTorch forward (for correctness checking)."""
    lin = jnp.linspace(0.0, 1.0, resolution)
    hg, wg = jnp.meshgrid(lin, lin, indexing="ij")
    pos = jnp.stack([hg, wg, 1.0 - hg, 1.0 - wg], axis=-1)   # (H, W, 4)
    pos_feat = pos @ weight.T + bias                         # (H, W, C)
    return features + jnp.transpose(pos_feat, (2, 0, 1))[None]


# ----------------------------------------------------------------------------
# Demo
# ----------------------------------------------------------------------------

if __name__ == "__main__":
    key = jax.random.PRNGKey(0)
    pkey, xkey = jax.random.split(key)

    B, C, RES = 2, 4, 16                        # features: (2, 4, 16, 16) NCHW
    params = init_soft_position_embedding(pkey, n_channels=C, resolution=RES)
    features = jax.random.normal(xkey, (B, C, RES, RES), jnp.float32)

    fwd = jax.jit(soft_position_embedding)
    out = fwd(features, params["pos_grid_t"], params["weight"], params["bias"])
    jax.block_until_ready(out)

    ref = soft_position_embedding_ref(features, RES, params["weight"], params["bias"])
    assert out.shape == (B, C, RES, RES)
    max_err = float(jnp.max(jnp.abs(out - ref)))
    assert bool(jnp.allclose(out, ref, atol=1e-5, rtol=1e-5)), max_err
    print("KERNEL_OK")
</pallas_src>

<mosaic_0001>
module attributes {stable_mosaic.version = 11 : i64} {
  func.func @_soft_pos_embed_kernel(%arg0: i32, %arg1: i32, %arg2: memref<1x4x256xf32, #tpu.memory_space<vmem>>, %arg3: memref<8x256xf32, #tpu.memory_space<vmem>>, %arg4: memref<4x8xf32, #tpu.memory_space<vmem>>, %arg5: memref<1x4x256xf32, #tpu.memory_space<vmem>>) attributes {dimension_semantics = [#tpu.dimension_semantics<parallel>, #tpu.dimension_semantics<parallel>], iteration_bounds = array<i64: 2, 1>, scalar_prefetch = 0 : i64, scratch_operands = 0 : i64, tpu.core_type = #tpu.core_type<tc>, window_params = [{transform_indices = @transform_0, window_bounds = array<i64: 1, 4, 256>}, {transform_indices = @transform_1, window_bounds = array<i64: 8, 256>}, {pipeline_mode = #tpu.pipeline_mode<synchronous>, transform_indices = @transform_2, window_bounds = array<i64: 4, 8>}, {transform_indices = @transform_3, window_bounds = array<i64: 1, 4, 256>}]} {
    %c0 = arith.constant 0 : index
    %c0_0 = arith.constant 0 : index
    %0 = vector.load %arg4[%c0, %c0_0] : memref<4x8xf32, #tpu.memory_space<vmem>>, vector<4x8xf32>
    %c0_1 = arith.constant 0 : index
    %c0_2 = arith.constant 0 : index
    %1 = vector.load %arg3[%c0_1, %c0_2] : memref<8x256xf32, #tpu.memory_space<vmem>>, vector<8x256xf32>
    %cst = arith.constant dense<0.000000e+00> : vector<4x256xf32>
    %2 = tpu.matmul %0, %1, %cst {dimension_numbers = #tpu.dot_dimension_numbers<[1], [0], [0], [1], [0, 0, 1, 1], [], []>} : vector<4x8xf32>, vector<8x256xf32>, vector<4x256xf32> -> vector<4x256xf32>
    %c0_3 = arith.constant 0 : index
    %c0_4 = arith.constant 0 : index
    %c0_5 = arith.constant 0 : index
    %3 = vector.load %arg2[%c0_3, %c0_4, %c0_5] : memref<1x4x256xf32, #tpu.memory_space<vmem>>, vector<1x4x256xf32>
    %4 = vector.shape_cast %2 : vector<4x256xf32> to vector<1x4x256xf32>
    %5 = arith.addf %3, %4 : vector<1x4x256xf32>
    %c0_6 = arith.constant 0 : index
    %c0_7 = arith.constant 0 : index
    %c0_8 = arith.constant 0 : index
    %6 = vector.load %arg5[%c0_6, %c0_7, %c0_8] : memref<1x4x256xf32, #tpu.memory_space<vmem>>, vector<1x4x256xf32>
    tpu.vector_store %arg5[%c0_6, %c0_7, %c0_8], %5 {strides = array<i32>} : memref<1x4x256xf32, #tpu.memory_space<vmem>>, vector<1x4x256xf32>,
    return
  }
  func.func @transform_0(%arg0: i32, %arg1: i32) -> (i32, i32, i32) {
    %c0_i32 = arith.constant 0 : i32
    %c0_i32_0 = arith.constant 0 : i32
    return %arg0, %c0_i32, %arg1 : i32, i32, i32
  }
  func.func @transform_1(%arg0: i32, %arg1: i32) -> (i32, i32) {
    %c0_i32 = arith.constant 0 : i32
    %c0_i32_0 = arith.constant 0 : i32
    return %c0_i32, %arg1 : i32, i32
  }
  func.func @transform_2(%arg0: i32, %arg1: i32) -> (i32, i32) {
    %c0_i32 = arith.constant 0 : i32
    %c0_i32_0 = arith.constant 0 : i32
    %c0_i32_1 = arith.constant 0 : i32
    return %c0_i32, %c0_i32_0 : i32, i32
  }
  func.func @transform_3(%arg0: i32, %arg1: i32) -> (i32, i32, i32) {
    %c0_i32 = arith.constant 0 : i32
    %c0_i32_0 = arith.constant 0 : i32
    return %arg0, %c0_i32, %arg1 : i32, i32, i32
  }
}

</mosaic_0001>

<llo_original>
// kernel: soft_position_embedding.1
$region0: #{soft_position_embedding.1}
  #allocation0 [shape = 'u32[]', space=smem, size = 0x4, offset = 0x4, fixed_abs, tag = 'smem constant byte address 0x4 - core index']
  #allocation1 [shape = 'u32[144,128]{1,0:T(1,128)}', space=vmem, size = 0x12000, scoped, tag = 'internal scratch']
  %s0 = inlined_call_operand.vmem [shape: f32[2,4,256], index: 0, kind: input, shape index: {}]
  %s1 = inlined_call_operand.vmem [shape: f32[8,256], index: 1, kind: input, shape index: {}]
  %s2 = inlined_call_operand.vmem [shape: f32[4,8], index: 2, kind: input, shape index: {}]
  %s3 = inlined_call_operand.vmem [shape: f32[2,4,256], index: 3, kind: output, shape index: {}]
  %s4 = sld [smem:[#allocation0]]
  $region45: #{soft_position_embedding.1} parent=0
    _
  %s6 = ssub.s32 1, %s4
  %s7 = scalar_select 0, %s6, %s4
  loop: start=0, step=1, limit=4
  $region2: #{soft_position_embedding.1} parent=0 // loop_pre_header
    _
  $region3: #{soft_position_embedding.1} parent=0 // loop_header
    %s9 = sphi 0, %s13
    %p10 = scmp.ge.s32.totalorder %s9, 4
    %s16 = sphi 0, %s28
    %s17 = sphi 0, %s24
    %s18 = sphi 0, %s16
    %s19 = sphi 0, %s17
    %s20 = sphi 0, %s18
    %s21 = sphi 0, %s19
    %s33 = sphi 0, %s35
    %s36 = sphi 0, %s33
    %s37 = sphi 0, %s36
    %s53 = sphi 0, %s37
    %s59 = sphi 0, %s61
    %s62 = sphi 0, %s59
    %s63 = sphi 0, %s62
    %s79 = sphi 0, %s63
    %s83 = sphi 0, %s83
    %s85 = sphi 0, %s83
    %s86 = sphi 0, %s85
    %s100 = sphi 0, %s86
    %s108 = sphi 0, %s110
    %s111 = sphi 0, %s108
    %s112 = sphi 0, %s111
    %s128 = sphi 0, %s112
  $region4: #{soft_position_embedding.1} parent=0 // loop_header_branch
    %12 = sbr.rel (%p10) target = $region8
  $region5: #{soft_position_embedding.1} parent=0 // loop_body
    %s14 = ssub.s32 %s9, 1
    %s15 = ssub.s32 %s9, 2
    %s22 = sadd.s32 1, %s17
    %p23 = scmp.ge.s32.totalorder %s22, 1
    %s24 = scalar_select %p23, 0, %s22
    %s25 = sadd.s32 1, %s16
    %s26 = scalar_select %p23, %s25, %s16
    %p27 = scmp.ge.s32.totalorder %s26, 2
    %s28 = scalar_select %p27, 0, %s26
    %s29 = ssub.s32 %s16, %s28
    %s30 = ssub.s32 %s17, %s24
    %s31 = sor.u32 %s29, %s30
    %p32 = scmp.eq.s32.totalorder %s31, 0
    %s34 = sadd.s32 %s33, 1
    %s35 = scalar_select %p32, %s33, %s34
    %p38 = pneg %p32
    %p39 = scmp.eq.s32.totalorder %s9, 1
    %p40 = por %p38, %p39
    %p41 = scmp.ne.s32.totalorder %s33, %s36
    %p42 = scmp.eq.s32.totalorder %s9, 0
    %p43 = por %p41, %p42
    %p44 = scmp.ne.s32.totalorder %s33, %s36
    %p45 = scmp.eq.s32.totalorder %s14, 1
    %p46 = por %p44, %p45
    %p47 = scmp.ne.s32.totalorder %s36, %s37
    %p48 = scmp.eq.s32.totalorder %s14, 0
    %p49 = por %p47, %p48
    %p50 = scmp.ne.s32.totalorder %s36, %s37
    %p51 = scmp.eq.s32.totalorder %s15, 1
    %p52 = por %p50, %p51
    %p54 = scmp.ne.s32.totalorder %s37, %s53
    %p55 = scmp.eq.s32.totalorder %s15, 0
    %p56 = por %p54, %p55
    %s57 = ssub.s32 %s17, %s24
    %p58 = scmp.eq.s32.totalorder %s57, 0
    %s60 = sadd.s32 %s59, 1
    %s61 = scalar_select %p58, %s59, %s60
    %p64 = pneg %p58
    %p65 = scmp.eq.s32.totalorder %s9, 1
    %p66 = por %p64, %p65
    %p67 = scmp.ne.s32.totalorder %s59, %s62
    %p68 = scmp.eq.s32.totalorder %s9, 0
    %p69 = por %p67, %p68
    %p70 = scmp.ne.s32.totalorder %s59, %s62
    %p71 = scmp.eq.s32.totalorder %s14, 1
    %p72 = por %p70, %p71
    %p73 = scmp.ne.s32.totalorder %s62, %s63
    %p74 = scmp.eq.s32.totalorder %s14, 0
    %p75 = por %p73, %p74
    %p76 = scmp.ne.s32.totalorder %s62, %s63
    %p77 = scmp.eq.s32.totalorder %s15, 1
    %p78 = por %p76, %p77
    %p80 = scmp.ne.s32.totalorder %s63, %s79
    %p81 = scmp.eq.s32.totalorder %s15, 0
    %p82 = por %p80, %p81
    %s84 = sadd.s32 %s83, 1
    %p87 = scmp.eq.s32.totalorder %s9, 1
    %p88 = scmp.ne.s32.totalorder %s83, %s85
    %p89 = scmp.eq.s32.totalorder %s9, 0
    %p90 = por %p88, %p89
    %p91 = scmp.ne.s32.totalorder %s83, %s85
    %p92 = scmp.eq.s32.totalorder %s14, 1
    %p93 = por %p91, %p92
    %p94 = scmp.ne.s32.totalorder %s85, %s86
    %p95 = scmp.eq.s32.totalorder %s14, 0
    %p96 = por %p94, %p95
    %p97 = scmp.ne.s32.totalorder %s85, %s86
    %p98 = scmp.eq.s32.totalorder %s15, 1
    %p99 = por %p97, %p98
    %p101 = scmp.ne.s32.totalorder %s86, %s100
    %p102 = scmp.eq.s32.totalorder %s15, 0
    %p103 = por %p101, %p102
    %s104 = ssub.s32 %s16, %s28
    %s105 = ssub.s32 %s17, %s24
    %s106 = sor.u32 %s104, %s105
    %p107 = scmp.eq.s32.totalorder %s106, 0
    %s109 = sadd.s32 %s108, 1
    %s110 = scalar_select %p107, %s108, %s109
    %p113 = pneg %p107
    %p114 = scmp.eq.s32.totalorder %s9, 1
    %p115 = por %p113, %p114
    %p116 = scmp.ne.s32.totalorder %s108, %s111
    %p117 = scmp.eq.s32.totalorder %s9, 0
    %p118 = por %p116, %p117
    %p119 = scmp.ne.s32.totalorder %s108, %s111
    %p120 = scmp.eq.s32.totalorder %s14, 1
    %p121 = por %p119, %p120
    %p122 = scmp.ne.s32.totalorder %s111, %s112
    %p123 = scmp.eq.s32.totalorder %s14, 0
    %p124 = por %p122, %p123
    %p125 = scmp.ne.s32.totalorder %s111, %s112
    %p126 = scmp.eq.s32.totalorder %s15, 1
    %p127 = por %p125, %p126
    %p129 = scmp.ne.s32.totalorder %s112, %s128
    %p130 = scmp.eq.s32.totalorder %s15, 0
    %p131 = por %p129, %p130
    %p132 = scmp.le.s32.totalorder 1, %s9
    %p133 = scmp.lt.s32.totalorder %s9, 3
    %p134 = pnand %p132, %p133
    %p135 = pneg %p134
    // Predicated region
    $region9: #{soft_position_embedding.1} parent=5 // pred_check
      _
    $region10: #{soft_position_embedding.1} parent=5 // pred_check_branch
      %137 = sbr.rel (%p134) target = $region12
    $region11: #{soft_position_embedding.1} parent=5 // pred_region
      %s138 = ssub.s32 %s9, 1
      // Predicated region
      $region13: #{soft_position_embedding.1} parent=11 // pred_check
        %p139 = pneg %p75
      $region14: #{soft_position_embedding.1} parent=11 // pred_check_branch
        %141 = sbr.rel (%p139) target = $region16
      $region15: #{soft_position_embedding.1} parent=11 // pred_region
        %s142 = smul.u32 2, %s19
        %p143 = scmp.lt.s32.totalorder %s142, 1
        %s144 = scalar_select %p143, %s142, 1
        %s145 = smul.addr %s144, 8
        %s146 = scalar_lea.vmem %s1, %s145
        %s147 = smul.u32 2, %s19
      $region16: #{soft_position_embedding.1} parent=11 // pred_fallthru
        _
      // Predicated region
      $region17: #{soft_position_embedding.1} parent=11 // pred_check
        %p148 = pneg %p96
      $region18: #{soft_position_embedding.1} parent=11 // pred_check_branch
        %150 = sbr.rel (%p148) target = $region20
      $region19: #{soft_position_embedding.1} parent=11 // pred_region
        _
      $region20: #{soft_position_embedding.1} parent=11 // pred_fallthru
        _
    $region12: #{soft_position_embedding.1} parent=5 // pred_fallthru
      _
    %p151 = scmp.lt.s32.totalorder %s9, 2
    // Predicated region
    $region21: #{soft_position_embedding.1} parent=5 // pred_check
      %p152 = pneg %p151
    $region22: #{soft_position_embedding.1} parent=5 // pred_check_branch
      %154 = sbr.rel (%p152) target = $region24
    $region23: #{soft_position_embedding.1} parent=5 // pred_region
      // Predicated region
      $region25: #{soft_position_embedding.1} parent=23 // pred_check
        %p155 = pneg %p43
      $region26: #{soft_position_embedding.1} parent=23 // pred_check_branch
        %157 = sbr.rel (%p155) target = $region28
      $region27: #{soft_position_embedding.1} parent=23 // pred_region
        %s158 = smul.u32 2, %s17
        %p159 = scmp.lt.s32.totalorder %s16, 1
        %s160 = scalar_select %p159, %s16, 1
        %p161 = scmp.lt.s32.totalorder %s158, 1
        %s162 = scalar_select %p161, %s158, 1
        %s163 = smul.addr %s160, 2
        %s164 = sadd.s32 %s162, %s163
        %s165 = smul.addr %s164, 4
        %s166 = scalar_lea.vmem %s0, %s165
        %s167 = smul.u32 2, %s17
      $region28: #{soft_position_embedding.1} parent=23 // pred_fallthru
        _
    $region24: #{soft_position_embedding.1} parent=5 // pred_fallthru
      _
    %p168 = scmp.le.s32.totalorder 1, %s9
    %p169 = scmp.lt.s32.totalorder %s9, 3
    %p170 = pnand %p168, %p169
    %p171 = pneg %p170
    // Predicated region
    $region29: #{soft_position_embedding.1} parent=5 // pred_check
      _
    $region30: #{soft_position_embedding.1} parent=5 // pred_check_branch
      %173 = sbr.rel (%p170) target = $region32
    $region31: #{soft_position_embedding.1} parent=5 // pred_region
      %s174 = ssub.s32 %s9, 1
      %s175 = smul.u32 2, %s19
      %p176 = scmp.lt.s32.totalorder %s18, 1
      %s177 = scalar_select %p176, %s18, 1
      %p178 = scmp.lt.s32.totalorder %s175, 1
      %s179 = scalar_select %p178, %s175, 1
      %s180 = smul.addr %s177, 2
      %s181 = sadd.s32 %s179, %s180
      %s182 = smul.addr %s181, 4
      %s183 = scalar_lea.vmem %s0, %s182
      %p184 = pneg %p49
      %p185 = pneg %p46
      %s186 = smul.u32 2, %s19
      %p187 = scmp.lt.s32.totalorder %s186, 1
      %s188 = scalar_select %p187, %s186, 1
      %s189 = smul.addr %s188, 8
      %s190 = scalar_lea.vmem %s1, %s189
      %p191 = pneg %p75
      %p192 = pneg %p72
      %p193 = pneg %p96
      %p194 = pneg %p93
      %p195 = pneg %p124
      %p196 = pneg %p121
      %s197 = smul.u32 2, %s19
      %p198 = scmp.lt.s32.totalorder %s18, 1
      %s199 = scalar_select %p198, %s18, 1
      %p200 = scmp.lt.s32.totalorder %s197, 1
      %s201 = scalar_select %p200, %s197, 1
      %s202 = smul.addr %s199, 2
      %s203 = sadd.s32 %s201, %s202
      %s204 = smul.addr %s203, 4
      %s205 = scalar_lea.vmem %s3, %s204
      %s206 = smul.u32 2, %s19
      %p207 = scmp.lt.s32.totalorder %s18, 1
      %s208 = scalar_select %p207, %s18, 1
      %p209 = scmp.lt.s32.totalorder %s206, 1
      %s210 = scalar_select %p209, %s206, 1
      %s211 = smul.addr %s208, 2
      %s212 = sadd.s32 %s210, %s211
      %s213 = smul.addr %s212, 4
      %s214 = scalar_lea.vmem %s0, %s213
      %s215 = smul.u32 2, %s19
      %s216 = smul.u32 2, %s19
      %p217 = scmp.lt.s32.totalorder %s216, 1
      %s218 = scalar_select %p217, %s216, 1
      %s219 = smul.addr %s218, 8
      %s220 = scalar_lea.vmem %s1, %s219
      %s221 = smul.u32 2, %s19
      %s222 = smul.u32 2, %s19
      %p223 = scmp.lt.s32.totalorder %s18, 1
      %s224 = scalar_select %p223, %s18, 1
      %p225 = scmp.lt.s32.totalorder %s222, 1
      %s226 = scalar_select %p225, %s222, 1
      %s227 = smul.addr %s224, 2
      %s228 = sadd.s32 %s226, %s227
      %s229 = smul.addr %s228, 4
      %s230 = scalar_lea.vmem %s3, %s229
      %s231 = smul.u32 2, %s19
      %v232 = vld [vmem:[%s2] sm:$0xf]
      %v233 = vld [vmem:[%s220] sm:$0xff]
      %v234 = vld [vmem:[%s220 + $0x8] sm:$0xff]
      %vm235 = vcmask 64512
      %v237 = vsel %vm235, %v232, 0
      %239 = vmatprep.subr.mxu0 0.0
      %240 = vmatpush1.msra.mxu0 0.0
      %241 = vmatprep.subr.mxu0 0.0
      %242 = vmatpush1.msra.mxu0 0.0
      %243 = vmatprep.subr.mxu0 0.0
      %244 = vmatpush1.msra.mxu0 0.0
      %245 = vmatprep.subr.mxu0 0.0
      %246 = vmatpush1.msra.mxu0 0.0
      %247 = vmatprep.subr.mxu0 0.0
      %248 = vmatpush1.msra.mxu0 0.0
      %249 = vmatprep.subr.mxu0 0.0
      %250 = vmatpush1.msra.mxu0 0.0
      %251 = vmatprep.subr.mxu0 0.0
      %252 = vmatpush1.msra.mxu0 0.0
      %253 = vmatprep.subr.mxu0 0.0
      %254 = vmatpush1.msra.mxu0 0.0
      %255 = vmatprep.subr.mxu0 0.0
      %256 = vmatpush1.msra.mxu0 0.0
      %257 = vmatprep.subr.mxu0 0.0
      %258 = vmatpush1.msra.mxu0 0.0
      %259 = vmatprep.subr.mxu0 0.0
      %260 = vmatpush1.msra.mxu0 0.0
      %261 = vmatprep.subr.mxu0 0.0
      %262 = vmatpush1.msra.mxu0 0.0
      %263 = vmatprep.subr.mxu0 0.0
      %264 = vmatpush1.msra.mxu0 0.0
      %265 = vmatprep.subr.mxu0 0.0
      %266 = vmatpush1.msra.mxu0 0.0
      %267 = vmatprep.subr.mxu0 0.0
      %268 = vmatpush1.msra.mxu0 0.0
      %269 = vmatprep.subr.mxu0 %v234
      %270 = vmatpush1.msra.mxu0 %v233
      %271 = vmatprep.subr.mxu0 0.0
      %272 = vmatpush2.msra.mxu0 0.0
      %273 = vmatprep.subr.mxu0 0.0
      %274 = vmatpush2.msra.mxu0 0.0
      %275 = vmatprep.subr.mxu0 0.0
      %276 = vmatpush2.msra.mxu0 0.0
      %277 = vmatprep.subr.mxu0 0.0
      %278 = vmatpush2.msra.mxu0 0.0
      %279 = vmatprep.subr.mxu0 0.0
      %280 = vmatpush2.msra.mxu0 0.0
      %281 = vmatprep.subr.mxu0 0.0
      %282 = vmatpush2.msra.mxu0 0.0
      %283 = vmatprep.subr.mxu0 0.0
      %284 = vmatpush2.msra.mxu0 0.0
      %285 = vmatprep.subr.mxu0 0.0
      %286 = vmatpush2.msra.mxu0 0.0
      %287 = vmatprep.subr.mxu0 0.0
      %288 = vmatpush2.msra.mxu0 0.0
      %289 = vmatprep.subr.mxu0 0.0
      %290 = vmatpush2.msra.mxu0 0.0
      %291 = vmatprep.subr.mxu0 0.0
      %292 = vmatpush2.msra.mxu0 0.0
      %293 = vmatprep.subr.mxu0 0.0
      %294 = vmatpush2.msra.mxu0 0.0
      %295 = vmatprep.subr.mxu0 0.0
      %296 = vmatpush2.msra.mxu0 0.0
      %297 = vmatprep.subr.mxu0 0.0
      %298 = vmatpush2.msra.mxu0 0.0
      %299 = vmatprep.subr.mxu0 0.0
      %300 = vmatpush2.msra.mxu0 0.0
      %301 = vmatprep.subr.mxu0 0.0
      %302 = vmatpush2.msra.mxu0 0.0
      %303 = vmatprep.mubr.f32.mxu0 0.0
      %304 = vmatmul.mubr.f32.gmra.mxu0 %v237
      %v305 = vpop.f32.mrf.mxu0
      %v306 = vadd.f32 0.0, %v305
      %v307 = vpop.f32.mrf.mxu0
      %v308 = vadd.f32 0.0, %v307
      %309 = vdwg.mxu0
      %v310 = vld [vmem:[%s214] sm:$0xff]
      %v313 = vcombine.low %v306, %v308
      %v315 = vadd.f32 %v310, %v313
      %316 = vst [vmem:[%s230] sm:$0xff] %v315
      %s317 = smul.u32 2, %s19
      %p318 = scmp.lt.s32.totalorder %s18, 1
      %s319 = scalar_select %p318, %s18, 1
      %p320 = scmp.lt.s32.totalorder %s317, 1
      %s321 = scalar_select %p320, %s317, 1
      %s322 = smul.addr %s319, 2
      %s323 = sadd.s32 %s321, %s322
      %s324 = smul.addr %s323, 4
      %s325 = scalar_lea.vmem %s3, %s324
      // Predicated region
      $region33: #{soft_position_embedding.1} parent=31 // pred_check
        %p326 = pneg %p121
      $region34: #{soft_position_embedding.1} parent=31 // pred_check_branch
        %328 = sbr.rel (%p326) target = $region36
      $region35: #{soft_position_embedding.1} parent=31 // pred_region
        %s329 = smul.u32 2, %s19
      $region36: #{soft_position_embedding.1} parent=31 // pred_fallthru
        _
    $region32: #{soft_position_embedding.1} parent=5 // pred_fallthru
      _
    %p330 = scmp.le.s32.totalorder 2, %s9
    // Predicated region
    $region37: #{soft_position_embedding.1} parent=5 // pred_check
      %p331 = pneg %p330
    $region38: #{soft_position_embedding.1} parent=5 // pred_check_branch
      %333 = sbr.rel (%p331) target = $region40
    $region39: #{soft_position_embedding.1} parent=5 // pred_region
      %s334 = ssub.s32 %s9, 2
      // Predicated region
      $region41: #{soft_position_embedding.1} parent=39 // pred_check
        %p335 = pneg %p127
      $region42: #{soft_position_embedding.1} parent=39 // pred_check_branch
        %337 = sbr.rel (%p335) target = $region44
      $region43: #{soft_position_embedding.1} parent=39 // pred_region
        %s338 = smul.u32 2, %s21
        %p339 = scmp.lt.s32.totalorder %s20, 1
        %s340 = scalar_select %p339, %s20, 1
        %p341 = scmp.lt.s32.totalorder %s338, 1
        %s342 = scalar_select %p341, %s338, 1
        %s343 = smul.addr %s340, 2
        %s344 = sadd.s32 %s342, %s343
        %s345 = smul.addr %s344, 4
        %s346 = scalar_lea.vmem %s3, %s345
      $region44: #{soft_position_embedding.1} parent=39 // pred_fallthru
        _
    $region40: #{soft_position_embedding.1} parent=5 // pred_fallthru
      _
  $region6: #{soft_position_embedding.1} parent=0 // loop_footer
    %s13 = sadd.s32 1, %s9
  $region7: #{soft_position_embedding.1} parent=0 // loop_footer_branch
    %8 = sbr.rel target = $region3
  $region8: #{soft_position_embedding.1} parent=0 // loop_exit
    _

</llo_original>
